<compile_context>
chip_gen: v6e
topology: v6e:2x2x1
jax: 0.10.0
libtpu: 0.0.40
codegen_flags: <defaults>
</compile_context>

<pallas_src>
import math
from functools import partial

import jax
import jax.numpy as jnp
from jax.experimental import pallas as pl
from jax.experimental.pallas import tpu as pltpu


# ---------------------------------------------------------------------------
# Kernels
# ---------------------------------------------------------------------------
def _gate_kernel_f32out(w_ref, u_ref, x_ref, h_ref, b_ref, o_ref, *, act):
    """f32 output: accumulate directly into the resident output block."""
    k = pl.program_id(2)

    @pl.when(k == 0)
    def _init():
        o_ref[...] = b_ref[...].astype(jnp.float32)

    o_ref[...] += jnp.dot(w_ref[...], x_ref[...],
                          preferred_element_type=jnp.float32)
    o_ref[...] += jnp.dot(u_ref[...], h_ref[...],
                          preferred_element_type=jnp.float32)

    @pl.when(k == pl.num_programs(2) - 1)
    def _finalize():
        o_ref[...] = act(o_ref[...])


def _gate_kernel_acc(w_ref, u_ref, x_ref, h_ref, b_ref, o_ref, acc_ref, *, act):
    """Non-f32 output: accumulate in an f32 VMEM scratch, cast on finalize."""
    k = pl.program_id(2)

    @pl.when(k == 0)
    def _init():
        acc_ref[...] = b_ref[...].astype(jnp.float32)

    acc_ref[...] += jnp.dot(w_ref[...], x_ref[...],
                            preferred_element_type=jnp.float32)
    acc_ref[...] += jnp.dot(u_ref[...], h_ref[...],
                            preferred_element_type=jnp.float32)

    @pl.when(k == pl.num_programs(2) - 1)
    def _finalize():
        o_ref[...] = act(acc_ref[...]).astype(o_ref.dtype)


# ---------------------------------------------------------------------------
# Tiling helpers
# ---------------------------------------------------------------------------
def _round_up(x, m):
    return ((x + m - 1) // m) * m


def _choose_tile(dim, preferred):
    """Return (tile, padded_dim).

    * dim <= preferred: a single full-extent block (always legal), no pad.
    * dim >  preferred: use the aligned preferred tile and pad `dim` up to a
      multiple of it (edge padding handled in the wrapper, output sliced).
    """
    if dim <= preferred:
        return dim, dim
    return preferred, _round_up(dim, preferred)


def _pad2d(a, rows, cols):
    r, c = a.shape
    if r == rows and c == cols:
        return a
    return jnp.pad(a, ((0, rows - r), (0, cols - c)))


# ---------------------------------------------------------------------------
# Forward
# ---------------------------------------------------------------------------
def prepare_gate_weights(W, U, matmul_dtype=jnp.bfloat16):
    """One-time weight cast (hoist out of the per-step forward for static
    parameters; `gate_forward`'s internal astype is then a no-op)."""
    if matmul_dtype is None:
        return W, U
    return W.astype(matmul_dtype), U.astype(matmul_dtype)


def gate_forward(W, U, bias, node_embs, h, *, act=jax.nn.sigmoid,
                 matmul_dtype=jnp.bfloat16, out_dtype=None,
                 tm=512, tn=512, tk=1024):
    """act(W @ node_embs + U @ h + bias) as a tiled Pallas GEMM pair.

    matmul_dtype: dtype fed to the MXU (default bf16; pass None for pure f32).
    Accumulation, bias add and the activation are always f32.
    """
    input_dim, output_dim = bias.shape
    assert W.shape == (input_dim, input_dim)
    assert U.shape == (input_dim, input_dim)
    assert node_embs.shape == (input_dim, output_dim)
    assert h.shape == (input_dim, output_dim)

    out_dtype = jnp.dtype(out_dtype) if out_dtype is not None \
        else jnp.dtype(node_embs.dtype)

    if matmul_dtype is not None:
        W = W.astype(matmul_dtype)
        U = U.astype(matmul_dtype)
        x = node_embs.astype(matmul_dtype)
        hh = h.astype(matmul_dtype)
    else:
        x, hh = node_embs, h

    M, K, N = input_dim, input_dim, output_dim

    tm, Mp = _choose_tile(M, tm)   # sublane axis of W/U/bias/out
    tn, Np = _choose_tile(N, tn)   # lane axis of x/h/bias/out
    tk, Kp = _choose_tile(K, tk)   # contraction axis

    # Pad up to tile multiples only when needed (zero K-padding is exact for
    # the matmul; padded M/N rows/cols are sliced off below).
    Wp = _pad2d(W, Mp, Kp)
    Up = _pad2d(U, Mp, Kp)
    xp = _pad2d(x, Kp, Np)
    hp = _pad2d(hh, Kp, Np)
    bp = _pad2d(bias, Mp, Np)

    grid = (Mp // tm, Np // tn, Kp // tk)

    if out_dtype == jnp.float32:
        kernel = partial(_gate_kernel_f32out, act=act)
        scratch_shapes = []
    else:
        kernel = partial(_gate_kernel_acc, act=act)
        scratch_shapes = [pltpu.VMEM((tm, tn), jnp.float32)]

    out = pl.pallas_call(
        kernel,
        out_shape=jax.ShapeDtypeStruct((Mp, Np), out_dtype),
        grid=grid,
        in_specs=[
            pl.BlockSpec((tm, tk), lambda i, j, k: (i, k)),   # W
            pl.BlockSpec((tm, tk), lambda i, j, k: (i, k)),   # U
            pl.BlockSpec((tk, tn), lambda i, j, k: (k, j)),   # node_embs
            pl.BlockSpec((tk, tn), lambda i, j, k: (k, j)),   # h
            pl.BlockSpec((tm, tn), lambda i, j, k: (i, j)),   # bias (f32)
        ],
        out_specs=pl.BlockSpec((tm, tn), lambda i, j, k: (i, j)),
        scratch_shapes=scratch_shapes,
        compiler_params=pltpu.CompilerParams(
            dimension_semantics=("parallel", "parallel", "arbitrary"),
            vmem_limit_bytes=48 * 1024 * 1024,   # safe on v7x's 64 MiB VMEM
        ),
    )(Wp, Up, xp, hp, bp)

    if (Mp, Np) != (M, N):
        out = out[:M, :N]
    return out


# ---------------------------------------------------------------------------
# Glorot init (matches the PyTorch helper's intent)
# ---------------------------------------------------------------------------
def init_glorot(key, shape, dtype=jnp.float32):
    fan_in, fan_out = shape[0], shape[1]
    limit = math.sqrt(6.0 / (fan_in + fan_out))
    return jax.random.uniform(key, shape, dtype, minval=-limit, maxval=limit)


if __name__ == "__main__":
    input_dim = 32   # feature dimension (rows)
    output_dim = 16  # number of nodes (cols)

    key = jax.random.PRNGKey(0)
    k_w, k_u, k_b, k_x, k_h = jax.random.split(key, 5)

    W = init_glorot(k_w, (input_dim, input_dim))
    U = init_glorot(k_u, (input_dim, input_dim))
    bias = init_glorot(k_b, (input_dim, output_dim))

    node_embs = jax.random.normal(k_x, (input_dim, output_dim), jnp.float32)
    h = jax.random.normal(k_h, (input_dim, output_dim), jnp.float32)

    # Reference in plain JAX (same semantics as the PyTorch forward).
    ref = jax.nn.sigmoid(W @ node_embs + U @ h + bias)

    # Default (bf16 MXU inputs, f32 accumulation/epilogue).
    Wb, Ub = prepare_gate_weights(W, U, jnp.bfloat16)   # hoisted weight cast
    out_bf16 = gate_forward(Wb, Ub, bias, node_embs, h)
    jax.block_until_ready(out_bf16)
    assert out_bf16.shape == (input_dim, output_dim)
    assert jnp.allclose(out_bf16, ref, atol=2e-2, rtol=2e-2), \
        float(jnp.max(jnp.abs(out_bf16 - ref)))

    # Pure-f32 path (tight tolerance).
    out_f32 = gate_forward(W, U, bias, node_embs, h, matmul_dtype=None)
    jax.block_until_ready(out_f32)
    assert jnp.allclose(out_f32, ref, atol=1e-5, rtol=1e-5), \
        float(jnp.max(jnp.abs(out_f32 - ref)))

    print("KERNEL_OK")
</pallas_src>

<mosaic_0001>
module attributes {stable_mosaic.version = 11 : i64} {
  func.func @_gate_kernel_f32out(%arg0: i32, %arg1: i32, %arg2: i32, %arg3: memref<32x32xbf16, #tpu.memory_space<vmem>>, %arg4: memref<32x32xbf16, #tpu.memory_space<vmem>>, %arg5: memref<32x16xbf16, #tpu.memory_space<vmem>>, %arg6: memref<32x16xbf16, #tpu.memory_space<vmem>>, %arg7: memref<32x16xf32, #tpu.memory_space<vmem>>, %arg8: memref<32x16xf32, #tpu.memory_space<vmem>>) attributes {dimension_semantics = [#tpu.dimension_semantics<parallel>, #tpu.dimension_semantics<parallel>, #tpu.dimension_semantics<arbitrary>], iteration_bounds = array<i64: 1, 1, 1>, scalar_prefetch = 0 : i64, scratch_operands = 0 : i64, tpu.core_type = #tpu.core_type<tc>, window_params = [{transform_indices = @transform_0, window_bounds = array<i64: 32, 32>}, {transform_indices = @transform_1, window_bounds = array<i64: 32, 32>}, {transform_indices = @transform_2, window_bounds = array<i64: 32, 16>}, {transform_indices = @transform_3, window_bounds = array<i64: 32, 16>}, {transform_indices = @transform_4, window_bounds = array<i64: 32, 16>}, {transform_indices = @transform_5, window_bounds = array<i64: 32, 16>}]} {
    %c0_i32 = arith.constant 0 : i32
    %0 = arith.cmpi eq, %arg2, %c0_i32 : i32
    %1 = arith.extui %0 : i1 to i32
    %c0_i32_0 = arith.constant 0 : i32
    %2 = arith.cmpi ne, %1, %c0_i32_0 : i32
    scf.if %2 {
      %c0_19 = arith.constant 0 : index
      %c0_20 = arith.constant 0 : index
      %18 = vector.load %arg7[%c0_19, %c0_20] : memref<32x16xf32, #tpu.memory_space<vmem>>, vector<32x16xf32>
      %c0_21 = arith.constant 0 : index
      %c0_22 = arith.constant 0 : index
      %19 = vector.load %arg8[%c0_21, %c0_22] : memref<32x16xf32, #tpu.memory_space<vmem>>, vector<32x16xf32>
      tpu.vector_store %arg8[%c0_21, %c0_22], %18 {strides = array<i32>} : memref<32x16xf32, #tpu.memory_space<vmem>>, vector<32x16xf32>,
    } else {
    }
    %c0 = arith.constant 0 : index
    %c0_1 = arith.constant 0 : index
    %3 = vector.load %arg8[%c0, %c0_1] : memref<32x16xf32, #tpu.memory_space<vmem>>, vector<32x16xf32>
    %c0_2 = arith.constant 0 : index
    %c0_3 = arith.constant 0 : index
    %4 = vector.load %arg3[%c0_2, %c0_3] : memref<32x32xbf16, #tpu.memory_space<vmem>>, vector<32x32xbf16>
    %c0_4 = arith.constant 0 : index
    %c0_5 = arith.constant 0 : index
    %5 = vector.load %arg5[%c0_4, %c0_5] : memref<32x16xbf16, #tpu.memory_space<vmem>>, vector<32x16xbf16>
    %cst = arith.constant dense<0.000000e+00> : vector<32x16xf32>
    %6 = tpu.matmul %4, %5, %cst {dimension_numbers = #tpu.dot_dimension_numbers<[1], [0], [0], [1], [0, 0, 1, 1], [], []>} : vector<32x32xbf16>, vector<32x16xbf16>, vector<32x16xf32> -> vector<32x16xf32>
    %7 = arith.addf %3, %6 : vector<32x16xf32>
    %c0_6 = arith.constant 0 : index
    %c0_7 = arith.constant 0 : index
    %8 = vector.load %arg8[%c0_6, %c0_7] : memref<32x16xf32, #tpu.memory_space<vmem>>, vector<32x16xf32>
    tpu.vector_store %arg8[%c0_6, %c0_7], %7 {strides = array<i32>} : memref<32x16xf32, #tpu.memory_space<vmem>>, vector<32x16xf32>,
    %c0_8 = arith.constant 0 : index
    %c0_9 = arith.constant 0 : index
    %9 = vector.load %arg8[%c0_8, %c0_9] : memref<32x16xf32, #tpu.memory_space<vmem>>, vector<32x16xf32>
    %c0_10 = arith.constant 0 : index
    %c0_11 = arith.constant 0 : index
    %10 = vector.load %arg4[%c0_10, %c0_11] : memref<32x32xbf16, #tpu.memory_space<vmem>>, vector<32x32xbf16>
    %c0_12 = arith.constant 0 : index
    %c0_13 = arith.constant 0 : index
    %11 = vector.load %arg6[%c0_12, %c0_13] : memref<32x16xbf16, #tpu.memory_space<vmem>>, vector<32x16xbf16>
    %cst_14 = arith.constant dense<0.000000e+00> : vector<32x16xf32>
    %12 = tpu.matmul %10, %11, %cst_14 {dimension_numbers = #tpu.dot_dimension_numbers<[1], [0], [0], [1], [0, 0, 1, 1], [], []>} : vector<32x32xbf16>, vector<32x16xbf16>, vector<32x16xf32> -> vector<32x16xf32>
    %13 = arith.addf %9, %12 : vector<32x16xf32>
    %c0_15 = arith.constant 0 : index
    %c0_16 = arith.constant 0 : index
    %14 = vector.load %arg8[%c0_15, %c0_16] : memref<32x16xf32, #tpu.memory_space<vmem>>, vector<32x16xf32>
    tpu.vector_store %arg8[%c0_15, %c0_16], %13 {strides = array<i32>} : memref<32x16xf32, #tpu.memory_space<vmem>>, vector<32x16xf32>,
    %c0_i32_17 = arith.constant 0 : i32
    %15 = arith.cmpi eq, %arg2, %c0_i32_17 : i32
    %16 = arith.extui %15 : i1 to i32
    %c0_i32_18 = arith.constant 0 : i32
    %17 = arith.cmpi ne, %16, %c0_i32_18 : i32
    scf.if %17 {
      %c0_19 = arith.constant 0 : index
      %c0_20 = arith.constant 0 : index
      %18 = vector.load %arg8[%c0_19, %c0_20] : memref<32x16xf32, #tpu.memory_space<vmem>>, vector<32x16xf32>
      %19 = arith.negf %18 : vector<32x16xf32>
      %20 = math.exp %19 : vector<32x16xf32>
      %cst_21 = arith.constant 1.000000e+00 : f32
      %21 = vector.broadcast %cst_21 : f32 to vector<32x16xf32>
      %22 = arith.addf %21, %20 : vector<32x16xf32>
      %23 = arith.divf %21, %22 : vector<32x16xf32>
      %c0_22 = arith.constant 0 : index
      %c0_23 = arith.constant 0 : index
      %24 = vector.load %arg8[%c0_22, %c0_23] : memref<32x16xf32, #tpu.memory_space<vmem>>, vector<32x16xf32>
      tpu.vector_store %arg8[%c0_22, %c0_23], %23 {strides = array<i32>} : memref<32x16xf32, #tpu.memory_space<vmem>>, vector<32x16xf32>,
    } else {
    }
    return
  }
  func.func @transform_0(%arg0: i32, %arg1: i32, %arg2: i32) -> (i32, i32) {
    %c0_i32 = arith.constant 0 : i32
    return %arg0, %arg2 : i32, i32
  }
  func.func @transform_1(%arg0: i32, %arg1: i32, %arg2: i32) -> (i32, i32) {
    %c0_i32 = arith.constant 0 : i32
    return %arg0, %arg2 : i32, i32
  }
  func.func @transform_2(%arg0: i32, %arg1: i32, %arg2: i32) -> (i32, i32) {
    %c0_i32 = arith.constant 0 : i32
    return %arg2, %arg1 : i32, i32
  }
  func.func @transform_3(%arg0: i32, %arg1: i32, %arg2: i32) -> (i32, i32) {
    %c0_i32 = arith.constant 0 : i32
    return %arg2, %arg1 : i32, i32
  }
  func.func @transform_4(%arg0: i32, %arg1: i32, %arg2: i32) -> (i32, i32) {
    %c0_i32 = arith.constant 0 : i32
    return %arg0, %arg1 : i32, i32
  }
  func.func @transform_5(%arg0: i32, %arg1: i32, %arg2: i32) -> (i32, i32) {
    %c0_i32 = arith.constant 0 : i32
    return %arg0, %arg1 : i32, i32
  }
}

</mosaic_0001>

<llo_original>
// kernel: tpu_custom_call.1
$region0: #{tpu_custom_call.1}
  #allocation0 [shape = 'u32[]', space=smem, size = 0x4, offset = 0x4, fixed_abs, tag = 'smem constant byte address 0x4 - core index']
  #allocation1 [shape = 'u32[144,128]{1,0:T(1,128)}', space=vmem, size = 0x12000, scoped, tag = 'internal scratch']
  %s0 = inlined_call_operand.vmem [shape: bf16[32,32], index: 0, kind: input, shape index: {}]
  %s1 = inlined_call_operand.vmem [shape: bf16[32,32], index: 1, kind: input, shape index: {}]
  %s2 = inlined_call_operand.vmem [shape: bf16[32,16], index: 2, kind: input, shape index: {}]
  %s3 = inlined_call_operand.vmem [shape: bf16[32,16], index: 3, kind: input, shape index: {}]
  %s4 = inlined_call_operand.vmem [shape: f32[32,16], index: 4, kind: input, shape index: {}]
  %s5 = inlined_call_operand.vmem [shape: f32[32,16], index: 5, kind: output, shape index: {}]
  %s6 = sld [smem:[#allocation0]]
  $region38: #{tpu_custom_call.1} parent=0
    _
  %s8 = ssub.s32 1, %s6
  %s9 = scalar_select 0, %s8, %s6
  // Predicated region
  $region2: #{tpu_custom_call.1} parent=0 // pred_check
    _
  $region3: #{tpu_custom_call.1} parent=0 // pred_check_branch
    %11 = sbr.rel (0) target = $region5
  $region4: #{tpu_custom_call.1} parent=0 // pred_region
    _
  $region5: #{tpu_custom_call.1} parent=0 // pred_fallthru
    _
  // Predicated region
  $region6: #{tpu_custom_call.1} parent=0 // pred_check
    _
  $region7: #{tpu_custom_call.1} parent=0 // pred_check_branch
    %13 = sbr.rel (0) target = $region9
  $region8: #{tpu_custom_call.1} parent=0 // pred_region
    _
  $region9: #{tpu_custom_call.1} parent=0 // pred_fallthru
    _
  // Predicated region
  $region10: #{tpu_custom_call.1} parent=0 // pred_check
    _
  $region11: #{tpu_custom_call.1} parent=0 // pred_check_branch
    %15 = sbr.rel (0) target = $region13
  $region12: #{tpu_custom_call.1} parent=0 // pred_region
    _
  $region13: #{tpu_custom_call.1} parent=0 // pred_fallthru
    _
  // Predicated region
  $region14: #{tpu_custom_call.1} parent=0 // pred_check
    _
  $region15: #{tpu_custom_call.1} parent=0 // pred_check_branch
    %17 = sbr.rel (0) target = $region17
  $region16: #{tpu_custom_call.1} parent=0 // pred_region
    _
  $region17: #{tpu_custom_call.1} parent=0 // pred_fallthru
    _
  // Predicated region
  $region18: #{tpu_custom_call.1} parent=0 // pred_check
    _
  $region19: #{tpu_custom_call.1} parent=0 // pred_check_branch
    %19 = sbr.rel (0) target = $region21
  $region20: #{tpu_custom_call.1} parent=0 // pred_region
    _
  $region21: #{tpu_custom_call.1} parent=0 // pred_fallthru
    _
  %p21 = scmp.eq.s32.totalorder 0, 0
  // Predicated region
  $region22: #{tpu_custom_call.1} parent=0 // pred_check
    %p22 = pneg %p21
  $region23: #{tpu_custom_call.1} parent=0 // pred_check_branch
    %24 = sbr.rel (%p22) target = $region25
  $region24: #{tpu_custom_call.1} parent=0 // pred_region
    %v25 = vld [vmem:[%s4] sm:$0xff]
    %v26 = vld [vmem:[%s4 + $0x8] sm:$0xff]
    %v27 = vld [vmem:[%s4 + $0x10] sm:$0xff]
    %v28 = vld [vmem:[%s4 + $0x18] sm:$0xff]
    %vm29 = vcmask 130048
    %30 = vst.msk [vmem:[%s5] sm:$0xff] %vm29, %v25
    %31 = vst.msk [vmem:[%s5 + $0x8] sm:$0xff] %vm29, %v26
    %32 = vst.msk [vmem:[%s5 + $0x10] sm:$0xff] %vm29, %v27
    %33 = vst.msk [vmem:[%s5 + $0x18] sm:$0xff] %vm29, %v28
  $region25: #{tpu_custom_call.1} parent=0 // pred_fallthru
    _
  %v34 = vld [vmem:[%s5] sm:$0xff]
  %v35 = vld [vmem:[%s5 + $0x8] sm:$0xff]
  %v36 = vld [vmem:[%s5 + $0x10] sm:$0xff]
  %v37 = vld [vmem:[%s5 + $0x18] sm:$0xff]
  %v38 = vld [vmem:[%s0] sm:$0xf]
  %v39 = vld [vmem:[%s0 + $0x4] sm:$0xf]
  %v40 = vld [vmem:[%s0 + $0x8] sm:$0xf]
  %v41 = vld [vmem:[%s0 + $0xc] sm:$0xf]
  %v42 = vld [vmem:[%s2] sm:$0xf]
  %v43 = vld [vmem:[%s2 + $0x4] sm:$0xf]
  %v44 = vld [vmem:[%s2 + $0x8] sm:$0xf]
  %v45 = vld [vmem:[%s2 + $0xc] sm:$0xf]
  %v50 = vunpack.c.l.b16 %v38
  %v51 = vunpack.c.l.b16 %v39
  %v52 = vunpack.c.l.b16 %v40
  %v53 = vunpack.c.l.b16 %v41
  %v54 = vpack.c.b16 %v51, %v50
  %v55 = vpack.c.b16 %v53, %v52
  %v60 = vunpack.c.l.b16 %v42
  %v61 = vunpack.c.l.b16 %v43
  %v62 = vunpack.c.l.b16 %v44
  %v63 = vunpack.c.l.b16 %v45
  %v64 = vpack.c.b16 %v61, %v60
  %v65 = vpack.c.b16 %v63, %v62
  %vm68 = vcmask 261120
  %v70 = vsel %vm68, %v54, 0
  %v73 = vsel %vm68, %v55, 0
  %75 = vmatprep.subr.bf16.mxu0 0
  %76 = vmatpush1.bf16.msra.mxu0 0
  %77 = vmatprep.subr.bf16.mxu0 0
  %78 = vmatpush1.bf16.msra.mxu0 0
  %79 = vmatprep.subr.bf16.mxu0 0
  %80 = vmatpush1.bf16.msra.mxu0 0
  %81 = vmatprep.subr.bf16.mxu0 0
  %82 = vmatpush1.bf16.msra.mxu0 0
  %83 = vmatprep.subr.bf16.mxu0 0
  %84 = vmatpush1.bf16.msra.mxu0 0
  %85 = vmatprep.subr.bf16.mxu0 0
  %86 = vmatpush1.bf16.msra.mxu0 0
  %87 = vmatprep.subr.bf16.mxu0 0
  %88 = vmatpush1.bf16.msra.mxu0 %v65
  %89 = vmatprep.subr.bf16.mxu0 0
  %90 = vmatpush1.bf16.msra.mxu0 %v64
  %91 = vmatprep.subr.bf16.mxu0 0
  %92 = vmatpush2.bf16.msra.mxu0 0
  %93 = vmatprep.subr.bf16.mxu0 0
  %94 = vmatpush2.bf16.msra.mxu0 0
  %95 = vmatprep.subr.bf16.mxu0 0
  %96 = vmatpush2.bf16.msra.mxu0 0
  %97 = vmatprep.subr.bf16.mxu0 0
  %98 = vmatpush2.bf16.msra.mxu0 0
  %99 = vmatprep.subr.bf16.mxu0 0
  %100 = vmatpush2.bf16.msra.mxu0 0
  %101 = vmatprep.subr.bf16.mxu0 0
  %102 = vmatpush2.bf16.msra.mxu0 0
  %103 = vmatprep.subr.bf16.mxu0 0
  %104 = vmatpush2.bf16.msra.mxu0 0
  %105 = vmatprep.subr.bf16.mxu0 0
  %106 = vmatpush2.bf16.msra.mxu0 0
  %107 = vmatprep.mubr.bf16.mxu0 0
  %108 = vmatmul.mubr.bf16.gmra.mxu0 %v70
  %v109 = vpop.f32.mrf.mxu0
  %v110 = vadd.f32 0.0, %v109
  %v111 = vpop.f32.mrf.mxu0
  %v112 = vpop.f32.mrf.mxu0
  %v113 = vadd.f32 0.0, %v112
  %v114 = vpop.f32.mrf.mxu0
  %115 = vmatprep.mubr.bf16.mxu0 0
  %116 = vmatmul.mubr.bf16.gmra.mxu0 %v73
  %v117 = vpop.f32.mrf.mxu0
  %v118 = vadd.f32 0.0, %v117
  %v119 = vpop.f32.mrf.mxu0
  %v120 = vpop.f32.mrf.mxu0
  %v121 = vadd.f32 0.0, %v120
  %v122 = vpop.f32.mrf.mxu0
  %123 = vdwg.mxu0
  %v124 = vadd.f32 %v34, %v110
  %v125 = vadd.f32 %v35, %v113
  %v126 = vadd.f32 %v36, %v118
  %v127 = vadd.f32 %v37, %v121
  %vm128 = vcmask 130048
  %129 = vst.msk [vmem:[%s5] sm:$0xff] %vm128, %v124
  %130 = vst.msk [vmem:[%s5 + $0x8] sm:$0xff] %vm128, %v125
  %131 = vst.msk [vmem:[%s5 + $0x10] sm:$0xff] %vm128, %v126
  %132 = vst.msk [vmem:[%s5 + $0x18] sm:$0xff] %vm128, %v127
  %v133 = vld [vmem:[%s5] sm:$0xff]
  %v134 = vld [vmem:[%s5 + $0x8] sm:$0xff]
  %v135 = vld [vmem:[%s5 + $0x10] sm:$0xff]
  %v136 = vld [vmem:[%s5 + $0x18] sm:$0xff]
  %v137 = vld [vmem:[%s1] sm:$0xf]
  %v138 = vld [vmem:[%s1 + $0x4] sm:$0xf]
  %v139 = vld [vmem:[%s1 + $0x8] sm:$0xf]
  %v140 = vld [vmem:[%s1 + $0xc] sm:$0xf]
  %v141 = vld [vmem:[%s3] sm:$0xf]
  %v142 = vld [vmem:[%s3 + $0x4] sm:$0xf]
  %v143 = vld [vmem:[%s3 + $0x8] sm:$0xf]
  %v144 = vld [vmem:[%s3 + $0xc] sm:$0xf]
  %v149 = vunpack.c.l.b16 %v137
  %v150 = vunpack.c.l.b16 %v138
  %v151 = vunpack.c.l.b16 %v139
  %v152 = vunpack.c.l.b16 %v140
  %v153 = vpack.c.b16 %v150, %v149
  %v154 = vpack.c.b16 %v152, %v151
  %v159 = vunpack.c.l.b16 %v141
  %v160 = vunpack.c.l.b16 %v142
  %v161 = vunpack.c.l.b16 %v143
  %v162 = vunpack.c.l.b16 %v144
  %v163 = vpack.c.b16 %v160, %v159
  %v164 = vpack.c.b16 %v162, %v161
  %v168 = vsel %vm68, %v153, 0
  %v171 = vsel %vm68, %v154, 0
  %173 = vmatprep.subr.bf16.mxu0 0
  %174 = vmatpush1.bf16.msra.mxu0 0
  %175 = vmatprep.subr.bf16.mxu0 0
  %176 = vmatpush1.bf16.msra.mxu0 0
  %177 = vmatprep.subr.bf16.mxu0 0
  %178 = vmatpush1.bf16.msra.mxu0 0
  %179 = vmatprep.subr.bf16.mxu0 0
  %180 = vmatpush1.bf16.msra.mxu0 0
  %181 = vmatprep.subr.bf16.mxu0 0
  %182 = vmatpush1.bf16.msra.mxu0 0
  %183 = vmatprep.subr.bf16.mxu0 0
  %184 = vmatpush1.bf16.msra.mxu0 0
  %185 = vmatprep.subr.bf16.mxu0 0
  %186 = vmatpush1.bf16.msra.mxu0 %v164
  %187 = vmatprep.subr.bf16.mxu0 0
  %188 = vmatpush1.bf16.msra.mxu0 %v163
  %189 = vmatprep.subr.bf16.mxu0 0
  %190 = vmatpush2.bf16.msra.mxu0 0
  %191 = vmatprep.subr.bf16.mxu0 0
  %192 = vmatpush2.bf16.msra.mxu0 0
  %193 = vmatprep.subr.bf16.mxu0 0
  %194 = vmatpush2.bf16.msra.mxu0 0
  %195 = vmatprep.subr.bf16.mxu0 0
  %196 = vmatpush2.bf16.msra.mxu0 0
  %197 = vmatprep.subr.bf16.mxu0 0
  %198 = vmatpush2.bf16.msra.mxu0 0
  %199 = vmatprep.subr.bf16.mxu0 0
  %200 = vmatpush2.bf16.msra.mxu0 0
  %201 = vmatprep.subr.bf16.mxu0 0
  %202 = vmatpush2.bf16.msra.mxu0 0
  %203 = vmatprep.subr.bf16.mxu0 0
  %204 = vmatpush2.bf16.msra.mxu0 0
  %205 = vmatprep.mubr.bf16.mxu0 0
  %206 = vmatmul.mubr.bf16.gmra.mxu0 %v168
  %v207 = vpop.f32.mrf.mxu0
  %v208 = vadd.f32 0.0, %v207
  %v209 = vpop.f32.mrf.mxu0
  %v210 = vpop.f32.mrf.mxu0
  %v211 = vadd.f32 0.0, %v210
  %v212 = vpop.f32.mrf.mxu0
  %213 = vmatprep.mubr.bf16.mxu0 0
  %214 = vmatmul.mubr.bf16.gmra.mxu0 %v171
  %v215 = vpop.f32.mrf.mxu0
  %v216 = vadd.f32 0.0, %v215
  %v217 = vpop.f32.mrf.mxu0
  %v218 = vpop.f32.mrf.mxu0
  %v219 = vadd.f32 0.0, %v218
  %v220 = vpop.f32.mrf.mxu0
  %221 = vdwg.mxu0
  %v222 = vadd.f32 %v133, %v208
  %v223 = vadd.f32 %v134, %v211
  %v224 = vadd.f32 %v135, %v216
  %v225 = vadd.f32 %v136, %v219
  %226 = vst.msk [vmem:[%s5] sm:$0xff] %vm128, %v222
  %227 = vst.msk [vmem:[%s5 + $0x8] sm:$0xff] %vm128, %v223
  %228 = vst.msk [vmem:[%s5 + $0x10] sm:$0xff] %vm128, %v224
  %229 = vst.msk [vmem:[%s5 + $0x18] sm:$0xff] %vm128, %v225
  // Predicated region
  $region26: #{tpu_custom_call.1} parent=0 // pred_check
    %p230 = pneg %p21
  $region27: #{tpu_custom_call.1} parent=0 // pred_check_branch
    %232 = sbr.rel (%p230) target = $region29
  $region28: #{tpu_custom_call.1} parent=0 // pred_region
    %v233 = vld [vmem:[%s5] sm:$0xff]
    %v234 = vld [vmem:[%s5 + $0x8] sm:$0xff]
    %v235 = vld [vmem:[%s5 + $0x10] sm:$0xff]
    %v236 = vld [vmem:[%s5 + $0x18] sm:$0xff]
    %v237 = vxor.u32 %v233, 2147483648
    %v238 = vxor.u32 %v234, 2147483648
    %v239 = vxor.u32 %v235, 2147483648
    %v240 = vxor.u32 %v236, 2147483648
    %v241 = vmul.f32 %v237, 1.442695
    %v242 = vpow.pop %v241
    %v243 = vmul.f32 %v238, 1.442695
    %v244 = vpow.pop %v243
    %v245 = vmul.f32 %v239, 1.442695
    %v246 = vpow.pop %v245
    %v247 = vmul.f32 %v240, 1.442695
    %v248 = vpow.pop %v247
    %v249 = vadd.f32 %v242, 1.0
    %v250 = vadd.f32 %v244, 1.0
    %v251 = vadd.f32 %v246, 1.0
    %v252 = vadd.f32 %v248, 1.0
    %v253 = vrcp.pop %v249
    %v254 = vmul.f32 1.0, %v253
    %v255 = vrcp.pop %v250
    %v256 = vmul.f32 1.0, %v255
    %v257 = vrcp.pop %v251
    %v258 = vmul.f32 1.0, %v257
    %v259 = vrcp.pop %v252
    %v260 = vmul.f32 1.0, %v259
    %261 = vst.msk [vmem:[%s5] sm:$0xff] %vm128, %v254
    %262 = vst.msk [vmem:[%s5 + $0x8] sm:$0xff] %vm128, %v256
    %263 = vst.msk [vmem:[%s5 + $0x10] sm:$0xff] %vm128, %v258
    %264 = vst.msk [vmem:[%s5 + $0x18] sm:$0xff] %vm128, %v260
  $region29: #{tpu_custom_call.1} parent=0 // pred_fallthru
    _
  // Predicated region
  $region30: #{tpu_custom_call.1} parent=0 // pred_check
    _
  $region31: #{tpu_custom_call.1} parent=0 // pred_check_branch
    %266 = sbr.rel (0) target = $region33
  $region32: #{tpu_custom_call.1} parent=0 // pred_region
    _
  $region33: #{tpu_custom_call.1} parent=0 // pred_fallthru
    _
  // Predicated region
  $region34: #{tpu_custom_call.1} parent=0 // pred_check
    _
  $region35: #{tpu_custom_call.1} parent=0 // pred_check_branch
    %268 = sbr.rel (0) target = $region37
  $region36: #{tpu_custom_call.1} parent=0 // pred_region
    _
  $region37: #{tpu_custom_call.1} parent=0 // pred_fallthru
    _

</llo_original>
